<compile_context>
chip_gen: v6e
topology: v6e:2x2x1
jax: 0.10.0
libtpu: 0.0.40
codegen_flags: <defaults>
</compile_context>

<pallas_src>
import functools

import jax
import jax.numpy as jnp
from jax.experimental import pallas as pl
from jax.experimental.pallas import tpu as pltpu


OUT_DIM = 2      # real output width of the last Linear
OUT_PAD = 128    # lane-dense padded output width


def _round_up(x, m):
    return (x + m - 1) // m * m


def mlp_kernel(snp_ref, ctx_ref, w1s_ref, w1c_ref, b1_ref,
               w2_ref, b2_ref, w3_ref, b3_ref, o_ref):
    cdt = w1s_ref.dtype  # compute dtype (f32 or bf16); cast is a no-op for f32

    # Layer 1: cat([snippet, context], 1) @ W1 == snp @ W1[:snp] + ctx @ W1[snp:].
    snp = snp_ref[...].astype(cdt)
    ctx = ctx_ref[...].astype(cdt)
    h = (jnp.dot(snp, w1s_ref[...], preferred_element_type=jnp.float32)
         + jnp.dot(ctx, w1c_ref[...], preferred_element_type=jnp.float32)
         + b1_ref[...])
    h = jnp.maximum(h, 0.0)                 # f32 epilogue on the f32 accumulator
    h = h.astype(cdt)

    # Layer 2 + ReLU.
    # TODO(synk): nn.Dropout is identity in eval/inference mode, so it is omitted.
    h = jnp.dot(h, w2_ref[...], preferred_element_type=jnp.float32) + b2_ref[...]
    h = jnp.maximum(h, 0.0)
    h = h.astype(cdt)

    # Layer 3: hid -> OUT_PAD (zero-padded, lane-dense; real columns = OUT_DIM).
    y = jnp.dot(h, w3_ref[...], preferred_element_type=jnp.float32) + b3_ref[...]
    o_ref[...] = y.astype(o_ref.dtype)


@functools.partial(jax.jit, static_argnames=("use_bf16", "b_tile"))
def mlp_forward(snippet, context, params, *, use_bf16=False, b_tile=1024):
    """Fused MLP forward via one pallas_call, batch-tiled over a 1-D grid."""
    w1, b1, w2, b2, w3, b3 = params
    B, snp_dim = snippet.shape
    ctx_dim = context.shape[1]
    hid = w1.shape[1]

    # Split first-layer weight so the concat never materializes.
    w1s = w1[:snp_dim, :]
    w1c = w1[snp_dim:, :]

    # Zero-pad the last layer to a lane-dense (hid, 128) output.
    w3p = jnp.zeros((hid, OUT_PAD), w3.dtype).at[:, :OUT_DIM].set(w3)
    b3p = jnp.zeros((1, OUT_PAD), b3.dtype).at[:, :OUT_DIM].set(b3)

    # Batch tiling (activations stay f32 in HBM -> sublane granularity 8).
    SUB = 8
    B_pad = _round_up(B, SUB)
    bt = _round_up(min(b_tile, B_pad), SUB)
    B_pad = _round_up(B_pad, bt)
    if B_pad != B:
        snippet = jnp.pad(snippet, ((0, B_pad - B), (0, 0)))
        context = jnp.pad(context, ((0, B_pad - B), (0, 0)))

    # Only the (small, VMEM-resident) weights are cast; activations are cast
    # in-kernel to avoid an extra HBM round-trip of a bf16 activation copy.
    compute_dtype = jnp.bfloat16 if use_bf16 else jnp.float32
    w1s = w1s.astype(compute_dtype)
    w1c = w1c.astype(compute_dtype)
    w2c = w2.astype(compute_dtype)
    w3c = w3p.astype(compute_dtype)
    # Biases stay f32: they are added to the f32 accumulator.

    grid = (B_pad // bt,)

    act_spec = lambda d: pl.BlockSpec((bt, d), lambda i: (i, 0))     # streamed
    res_spec = lambda shape: pl.BlockSpec(shape, lambda i: (0, 0))   # resident

    out = pl.pallas_call(
        mlp_kernel,
        out_shape=jax.ShapeDtypeStruct((B_pad, OUT_PAD), jnp.float32),
        grid=grid,
        in_specs=[
            act_spec(snp_dim),
            act_spec(ctx_dim),
            res_spec((snp_dim, hid)),
            res_spec((ctx_dim, hid)),
            res_spec((1, hid)),
            res_spec((hid, hid)),
            res_spec((1, hid)),
            res_spec((hid, OUT_PAD)),
            res_spec((1, OUT_PAD)),
        ],
        out_specs=pl.BlockSpec((bt, OUT_PAD), lambda i: (i, 0)),
        compiler_params=pltpu.CompilerParams(
            dimension_semantics=("parallel",)),   # batch tiles across TCs on v7x
    )(snippet, context, w1s, w1c, b1, w2c, b2, w3c, b3p)

    return out[:B, :OUT_DIM]


def init_params(key, snp_dim, ctx_dim, hid_dim, out_dim=OUT_DIM):
    """Deterministic parameter init (Kaiming-uniform-like, as in nn.Linear)."""
    d_in = snp_dim + ctx_dim
    ks = jax.random.split(key, 6)

    def linear(kw, kb, fan_in, fan_out):
        bound = 1.0 / jnp.sqrt(fan_in)
        w = jax.random.uniform(kw, (fan_in, fan_out), jnp.float32, -bound, bound)
        b = jax.random.uniform(kb, (1, fan_out), jnp.float32, -bound, bound)
        return w, b

    w1, b1 = linear(ks[0], ks[1], d_in, hid_dim)
    w2, b2 = linear(ks[2], ks[3], hid_dim, hid_dim)
    w3, b3 = linear(ks[4], ks[5], hid_dim, out_dim)
    return (w1, b1, w2, b2, w3, b3)


if __name__ == "__main__":
    snp_dim, ctx_dim, hid_dim = 256, 64, 256
    B = 8

    key = jax.random.PRNGKey(0)
    k_snp, k_ctx, k_param = jax.random.split(key, 3)

    snippet = jax.random.normal(k_snp, (B, snp_dim), jnp.float32)
    context = jax.random.normal(k_ctx, (B, ctx_dim), jnp.float32)
    params = init_params(k_param, snp_dim, ctx_dim, hid_dim)

    # Plain-JAX reference.
    w1, b1, w2, b2, w3, b3 = params
    x = jnp.concatenate([snippet, context], axis=1)
    ref = jnp.maximum(x @ w1 + b1, 0.0)
    ref = jnp.maximum(ref @ w2 + b2, 0.0)
    ref = ref @ w3 + b3

    # f32 path.
    out = jax.block_until_ready(mlp_forward(snippet, context, params))
    assert out.shape == (B, OUT_DIM)
    assert jnp.allclose(out, ref, atol=1e-4, rtol=1e-4)

    # bf16 MXU fast path (v6e/v7x) — looser tolerance for bf16 rounding.
    out_bf16 = jax.block_until_ready(
        mlp_forward(snippet, context, params, use_bf16=True))
    assert out_bf16.shape == (B, OUT_DIM)
    assert jnp.allclose(out_bf16, ref, atol=5e-2, rtol=5e-2)

    print("KERNEL_OK")
</pallas_src>

<mosaic_0001>
module attributes {stable_mosaic.version = 11 : i64} {
  func.func @mlp_kernel(%arg0: i32, %arg1: memref<8x256xf32, #tpu.memory_space<vmem>>, %arg2: memref<8x64xf32, #tpu.memory_space<vmem>>, %arg3: memref<256x256xf32, #tpu.memory_space<vmem>>, %arg4: memref<64x256xf32, #tpu.memory_space<vmem>>, %arg5: memref<1x256xf32, #tpu.memory_space<vmem>>, %arg6: memref<256x256xf32, #tpu.memory_space<vmem>>, %arg7: memref<1x256xf32, #tpu.memory_space<vmem>>, %arg8: memref<256x128xf32, #tpu.memory_space<vmem>>, %arg9: memref<1x128xf32, #tpu.memory_space<vmem>>, %arg10: memref<8x128xf32, #tpu.memory_space<vmem>>) attributes {dimension_semantics = [#tpu.dimension_semantics<parallel>], iteration_bounds = array<i64: 1>, scalar_prefetch = 0 : i64, scratch_operands = 0 : i64, tpu.core_type = #tpu.core_type<tc>, window_params = [{transform_indices = @transform_0, window_bounds = array<i64: 8, 256>}, {transform_indices = @transform_1, window_bounds = array<i64: 8, 64>}, {pipeline_mode = #tpu.pipeline_mode<synchronous>, transform_indices = @transform_2, window_bounds = array<i64: 256, 256>}, {pipeline_mode = #tpu.pipeline_mode<synchronous>, transform_indices = @transform_3, window_bounds = array<i64: 64, 256>}, {pipeline_mode = #tpu.pipeline_mode<synchronous>, transform_indices = @transform_4, window_bounds = array<i64: 1, 256>}, {pipeline_mode = #tpu.pipeline_mode<synchronous>, transform_indices = @transform_5, window_bounds = array<i64: 256, 256>}, {pipeline_mode = #tpu.pipeline_mode<synchronous>, transform_indices = @transform_6, window_bounds = array<i64: 1, 256>}, {pipeline_mode = #tpu.pipeline_mode<synchronous>, transform_indices = @transform_7, window_bounds = array<i64: 256, 128>}, {pipeline_mode = #tpu.pipeline_mode<synchronous>, transform_indices = @transform_8, window_bounds = array<i64: 1, 128>}, {transform_indices = @transform_9, window_bounds = array<i64: 8, 128>}]} {
    %c0 = arith.constant 0 : index
    %c0_0 = arith.constant 0 : index
    %0 = vector.load %arg1[%c0, %c0_0] : memref<8x256xf32, #tpu.memory_space<vmem>>, vector<8x256xf32>
    %c0_1 = arith.constant 0 : index
    %c0_2 = arith.constant 0 : index
    %1 = vector.load %arg2[%c0_1, %c0_2] : memref<8x64xf32, #tpu.memory_space<vmem>>, vector<8x64xf32>
    %c0_3 = arith.constant 0 : index
    %c0_4 = arith.constant 0 : index
    %2 = vector.load %arg3[%c0_3, %c0_4] : memref<256x256xf32, #tpu.memory_space<vmem>>, vector<256x256xf32>
    %cst = arith.constant dense<0.000000e+00> : vector<8x256xf32>
    %3 = tpu.matmul %0, %2, %cst {dimension_numbers = #tpu.dot_dimension_numbers<[1], [0], [0], [1], [0, 0, 1, 1], [], []>} : vector<8x256xf32>, vector<256x256xf32>, vector<8x256xf32> -> vector<8x256xf32>
    %c0_5 = arith.constant 0 : index
    %c0_6 = arith.constant 0 : index
    %4 = vector.load %arg4[%c0_5, %c0_6] : memref<64x256xf32, #tpu.memory_space<vmem>>, vector<64x256xf32>
    %cst_7 = arith.constant dense<0.000000e+00> : vector<8x256xf32>
    %5 = tpu.matmul %1, %4, %cst_7 {dimension_numbers = #tpu.dot_dimension_numbers<[1], [0], [0], [1], [0, 0, 1, 1], [], []>} : vector<8x64xf32>, vector<64x256xf32>, vector<8x256xf32> -> vector<8x256xf32>
    %6 = arith.addf %3, %5 : vector<8x256xf32>
    %c0_8 = arith.constant 0 : index
    %c0_9 = arith.constant 0 : index
    %7 = vector.load %arg5[%c0_8, %c0_9] : memref<1x256xf32, #tpu.memory_space<vmem>>, vector<1x256xf32>
    %8 = vector.broadcast %7 : vector<1x256xf32> to vector<8x256xf32>
    %9 = arith.addf %6, %8 : vector<8x256xf32>
    %cst_10 = arith.constant 0.000000e+00 : f32
    %10 = vector.broadcast %cst_10 : f32 to vector<8x256xf32>
    %11 = arith.maximumf %9, %10 : vector<8x256xf32>
    %c0_11 = arith.constant 0 : index
    %c0_12 = arith.constant 0 : index
    %12 = vector.load %arg6[%c0_11, %c0_12] : memref<256x256xf32, #tpu.memory_space<vmem>>, vector<256x256xf32>
    %cst_13 = arith.constant dense<0.000000e+00> : vector<8x256xf32>
    %13 = tpu.matmul %11, %12, %cst_13 {dimension_numbers = #tpu.dot_dimension_numbers<[1], [0], [0], [1], [0, 0, 1, 1], [], []>} : vector<8x256xf32>, vector<256x256xf32>, vector<8x256xf32> -> vector<8x256xf32>
    %c0_14 = arith.constant 0 : index
    %c0_15 = arith.constant 0 : index
    %14 = vector.load %arg7[%c0_14, %c0_15] : memref<1x256xf32, #tpu.memory_space<vmem>>, vector<1x256xf32>
    %15 = vector.broadcast %14 : vector<1x256xf32> to vector<8x256xf32>
    %16 = arith.addf %13, %15 : vector<8x256xf32>
    %cst_16 = arith.constant 0.000000e+00 : f32
    %17 = vector.broadcast %cst_16 : f32 to vector<8x256xf32>
    %18 = arith.maximumf %16, %17 : vector<8x256xf32>
    %c0_17 = arith.constant 0 : index
    %c0_18 = arith.constant 0 : index
    %19 = vector.load %arg8[%c0_17, %c0_18] : memref<256x128xf32, #tpu.memory_space<vmem>>, vector<256x128xf32>
    %cst_19 = arith.constant dense<0.000000e+00> : vector<8x128xf32>
    %20 = tpu.matmul %18, %19, %cst_19 {dimension_numbers = #tpu.dot_dimension_numbers<[1], [0], [0], [1], [0, 0, 1, 1], [], []>} : vector<8x256xf32>, vector<256x128xf32>, vector<8x128xf32> -> vector<8x128xf32>
    %c0_20 = arith.constant 0 : index
    %c0_21 = arith.constant 0 : index
    %21 = vector.load %arg9[%c0_20, %c0_21] : memref<1x128xf32, #tpu.memory_space<vmem>>, vector<1x128xf32>
    %22 = vector.broadcast %21 : vector<1x128xf32> to vector<8x128xf32>
    %23 = arith.addf %20, %22 : vector<8x128xf32>
    %c0_22 = arith.constant 0 : index
    %c0_23 = arith.constant 0 : index
    %24 = vector.load %arg10[%c0_22, %c0_23] : memref<8x128xf32, #tpu.memory_space<vmem>>, vector<8x128xf32>
    tpu.vector_store %arg10[%c0_22, %c0_23], %23 {strides = array<i32>} : memref<8x128xf32, #tpu.memory_space<vmem>>, vector<8x128xf32>,
    return
  }
  func.func @transform_0(%arg0: i32) -> (i32, i32) {
    %c0_i32 = arith.constant 0 : i32
    %c0_i32_0 = arith.constant 0 : i32
    return %arg0, %c0_i32 : i32, i32
  }
  func.func @transform_1(%arg0: i32) -> (i32, i32) {
    %c0_i32 = arith.constant 0 : i32
    %c0_i32_0 = arith.constant 0 : i32
    return %arg0, %c0_i32 : i32, i32
  }
  func.func @transform_2(%arg0: i32) -> (i32, i32) {
    %c0_i32 = arith.constant 0 : i32
    %c0_i32_0 = arith.constant 0 : i32
    %c0_i32_1 = arith.constant 0 : i32
    return %c0_i32, %c0_i32_0 : i32, i32
  }
  func.func @transform_3(%arg0: i32) -> (i32, i32) {
    %c0_i32 = arith.constant 0 : i32
    %c0_i32_0 = arith.constant 0 : i32
    %c0_i32_1 = arith.constant 0 : i32
    return %c0_i32, %c0_i32_0 : i32, i32
  }
  func.func @transform_4(%arg0: i32) -> (i32, i32) {
    %c0_i32 = arith.constant 0 : i32
    %c0_i32_0 = arith.constant 0 : i32
    %c0_i32_1 = arith.constant 0 : i32
    return %c0_i32, %c0_i32_0 : i32, i32
  }
  func.func @transform_5(%arg0: i32) -> (i32, i32) {
    %c0_i32 = arith.constant 0 : i32
    %c0_i32_0 = arith.constant 0 : i32
    %c0_i32_1 = arith.constant 0 : i32
    return %c0_i32, %c0_i32_0 : i32, i32
  }
  func.func @transform_6(%arg0: i32) -> (i32, i32) {
    %c0_i32 = arith.constant 0 : i32
    %c0_i32_0 = arith.constant 0 : i32
    %c0_i32_1 = arith.constant 0 : i32
    return %c0_i32, %c0_i32_0 : i32, i32
  }
  func.func @transform_7(%arg0: i32) -> (i32, i32) {
    %c0_i32 = arith.constant 0 : i32
    %c0_i32_0 = arith.constant 0 : i32
    %c0_i32_1 = arith.constant 0 : i32
    return %c0_i32, %c0_i32_0 : i32, i32
  }
  func.func @transform_8(%arg0: i32) -> (i32, i32) {
    %c0_i32 = arith.constant 0 : i32
    %c0_i32_0 = arith.constant 0 : i32
    %c0_i32_1 = arith.constant 0 : i32
    return %c0_i32, %c0_i32_0 : i32, i32
  }
  func.func @transform_9(%arg0: i32) -> (i32, i32) {
    %c0_i32 = arith.constant 0 : i32
    %c0_i32_0 = arith.constant 0 : i32
    return %arg0, %c0_i32 : i32, i32
  }
}

</mosaic_0001>

<llo_original>
// kernel: mlp_forward.1
$region0: #{mlp_forward.1}
  #allocation0 [shape = 'u32[]', space=smem, size = 0x4, offset = 0x4, fixed_abs, tag = 'smem constant byte address 0x4 - core index']
  #allocation1 [shape = 'u32[144,128]{1,0:T(1,128)}', space=vmem, size = 0x12000, scoped, tag = 'internal scratch']
  %s0 = inlined_call_operand.vmem [shape: f32[8,256], index: 0, kind: input, shape index: {}]
  %s1 = inlined_call_operand.vmem [shape: f32[8,64], index: 1, kind: input, shape index: {}]
  %s2 = inlined_call_operand.vmem [shape: f32[256,256], index: 2, kind: input, shape index: {}]
  %s3 = inlined_call_operand.vmem [shape: f32[64,256], index: 3, kind: input, shape index: {}]
  %s4 = inlined_call_operand.vmem [shape: f32[1,256], index: 4, kind: input, shape index: {}]
  %s5 = inlined_call_operand.vmem [shape: f32[256,256], index: 5, kind: input, shape index: {}]
  %s6 = inlined_call_operand.vmem [shape: f32[1,256], index: 6, kind: input, shape index: {}]
  %s7 = inlined_call_operand.vmem [shape: f32[256,128], index: 7, kind: input, shape index: {}]
  %s8 = inlined_call_operand.vmem [shape: f32[1,128], index: 8, kind: input, shape index: {}]
  %s9 = inlined_call_operand.vmem [shape: f32[8,128], index: 9, kind: output, shape index: {}]
  %s10 = sld [smem:[#allocation0]]
  $region46: #{mlp_forward.1} parent=0
    _
  %s12 = ssub.s32 1, %s10
  %s13 = scalar_select 0, %s12, %s10
  // Predicated region
  $region2: #{mlp_forward.1} parent=0 // pred_check
    _
  $region3: #{mlp_forward.1} parent=0 // pred_check_branch
    %15 = sbr.rel (0) target = $region5
  $region4: #{mlp_forward.1} parent=0 // pred_region
    _
  $region5: #{mlp_forward.1} parent=0 // pred_fallthru
    _
  // Predicated region
  $region6: #{mlp_forward.1} parent=0 // pred_check
    _
  $region7: #{mlp_forward.1} parent=0 // pred_check_branch
    %17 = sbr.rel (0) target = $region9
  $region8: #{mlp_forward.1} parent=0 // pred_region
    _
  $region9: #{mlp_forward.1} parent=0 // pred_fallthru
    _
  // Predicated region
  $region10: #{mlp_forward.1} parent=0 // pred_check
    _
  $region11: #{mlp_forward.1} parent=0 // pred_check_branch
    %19 = sbr.rel (0) target = $region13
  $region12: #{mlp_forward.1} parent=0 // pred_region
    _
  $region13: #{mlp_forward.1} parent=0 // pred_fallthru
    _
  // Predicated region
  $region14: #{mlp_forward.1} parent=0 // pred_check
    _
  $region15: #{mlp_forward.1} parent=0 // pred_check_branch
    %21 = sbr.rel (0) target = $region17
  $region16: #{mlp_forward.1} parent=0 // pred_region
    _
  $region17: #{mlp_forward.1} parent=0 // pred_fallthru
    _
  // Predicated region
  $region18: #{mlp_forward.1} parent=0 // pred_check
    _
  $region19: #{mlp_forward.1} parent=0 // pred_check_branch
    %23 = sbr.rel (0) target = $region21
  $region20: #{mlp_forward.1} parent=0 // pred_region
    _
  $region21: #{mlp_forward.1} parent=0 // pred_fallthru
    _
  // Predicated region
  $region22: #{mlp_forward.1} parent=0 // pred_check
    _
  $region23: #{mlp_forward.1} parent=0 // pred_check_branch
    %25 = sbr.rel (0) target = $region25
  $region24: #{mlp_forward.1} parent=0 // pred_region
    _
  $region25: #{mlp_forward.1} parent=0 // pred_fallthru
    _
  // Predicated region
  $region26: #{mlp_forward.1} parent=0 // pred_check
    _
  $region27: #{mlp_forward.1} parent=0 // pred_check_branch
    %27 = sbr.rel (0) target = $region29
  $region28: #{mlp_forward.1} parent=0 // pred_region
    _
  $region29: #{mlp_forward.1} parent=0 // pred_fallthru
    _
  // Predicated region
  $region30: #{mlp_forward.1} parent=0 // pred_check
    _
  $region31: #{mlp_forward.1} parent=0 // pred_check_branch
    %29 = sbr.rel (0) target = $region33
  $region32: #{mlp_forward.1} parent=0 // pred_region
    _
  $region33: #{mlp_forward.1} parent=0 // pred_fallthru
    _
  // Predicated region
  $region34: #{mlp_forward.1} parent=0 // pred_check
    _
  $region35: #{mlp_forward.1} parent=0 // pred_check_branch
    %31 = sbr.rel (0) target = $region37
  $region36: #{mlp_forward.1} parent=0 // pred_region
    _
  $region37: #{mlp_forward.1} parent=0 // pred_fallthru
    _
  %v32 = vld [vmem:[%s0] sm:$0xff]
  %v33 = vld [vmem:[%s0 + $0x8] sm:$0xff]
  %v34 = vld [vmem:[%s1] sm:$0xff]
  %v35 = vld [vmem:[%s2] sm:$0xff]
  %v36 = vld [vmem:[%s2 + $0x8] sm:$0xff]
  %v37 = vld [vmem:[%s2 + $0x10] sm:$0xff]
  %v38 = vld [vmem:[%s2 + $0x18] sm:$0xff]
  %v39 = vld [vmem:[%s2 + $0x20] sm:$0xff]
  %v40 = vld [vmem:[%s2 + $0x28] sm:$0xff]
  %v41 = vld [vmem:[%s2 + $0x30] sm:$0xff]
  %v42 = vld [vmem:[%s2 + $0x38] sm:$0xff]
  %v43 = vld [vmem:[%s2 + $0x40] sm:$0xff]
  %v44 = vld [vmem:[%s2 + $0x48] sm:$0xff]
  %v45 = vld [vmem:[%s2 + $0x50] sm:$0xff]
  %v46 = vld [vmem:[%s2 + $0x58] sm:$0xff]
  %v47 = vld [vmem:[%s2 + $0x60] sm:$0xff]
  %v48 = vld [vmem:[%s2 + $0x68] sm:$0xff]
  %v49 = vld [vmem:[%s2 + $0x70] sm:$0xff]
  %v50 = vld [vmem:[%s2 + $0x78] sm:$0xff]
  %v51 = vld [vmem:[%s2 + $0x80] sm:$0xff]
  %v52 = vld [vmem:[%s2 + $0x88] sm:$0xff]
  %v53 = vld [vmem:[%s2 + $0x90] sm:$0xff]
  %v54 = vld [vmem:[%s2 + $0x98] sm:$0xff]
  %v55 = vld [vmem:[%s2 + $0xa0] sm:$0xff]
  %v56 = vld [vmem:[%s2 + $0xa8] sm:$0xff]
  %v57 = vld [vmem:[%s2 + $0xb0] sm:$0xff]
  %v58 = vld [vmem:[%s2 + $0xb8] sm:$0xff]
  %v59 = vld [vmem:[%s2 + $0xc0] sm:$0xff]
  %v60 = vld [vmem:[%s2 + $0xc8] sm:$0xff]
  %v61 = vld [vmem:[%s2 + $0xd0] sm:$0xff]
  %v62 = vld [vmem:[%s2 + $0xd8] sm:$0xff]
  %v63 = vld [vmem:[%s2 + $0xe0] sm:$0xff]
  %v64 = vld [vmem:[%s2 + $0xe8] sm:$0xff]
  %v65 = vld [vmem:[%s2 + $0xf0] sm:$0xff]
  %v66 = vld [vmem:[%s2 + $0xf8] sm:$0xff]
  %v67 = vld [vmem:[%s2 + $0x100] sm:$0xff]
  %v68 = vld [vmem:[%s2 + $0x108] sm:$0xff]
  %v69 = vld [vmem:[%s2 + $0x110] sm:$0xff]
  %v70 = vld [vmem:[%s2 + $0x118] sm:$0xff]
  %v71 = vld [vmem:[%s2 + $0x120] sm:$0xff]
  %v72 = vld [vmem:[%s2 + $0x128] sm:$0xff]
  %v73 = vld [vmem:[%s2 + $0x130] sm:$0xff]
  %v74 = vld [vmem:[%s2 + $0x138] sm:$0xff]
  %v75 = vld [vmem:[%s2 + $0x140] sm:$0xff]
  %v76 = vld [vmem:[%s2 + $0x148] sm:$0xff]
  %v77 = vld [vmem:[%s2 + $0x150] sm:$0xff]
  %v78 = vld [vmem:[%s2 + $0x158] sm:$0xff]
  %v79 = vld [vmem:[%s2 + $0x160] sm:$0xff]
  %v80 = vld [vmem:[%s2 + $0x168] sm:$0xff]
  %v81 = vld [vmem:[%s2 + $0x170] sm:$0xff]
  %v82 = vld [vmem:[%s2 + $0x178] sm:$0xff]
  %v83 = vld [vmem:[%s2 + $0x180] sm:$0xff]
  %v84 = vld [vmem:[%s2 + $0x188] sm:$0xff]
  %v85 = vld [vmem:[%s2 + $0x190] sm:$0xff]
  %v86 = vld [vmem:[%s2 + $0x198] sm:$0xff]
  %v87 = vld [vmem:[%s2 + $0x1a0] sm:$0xff]
  %v88 = vld [vmem:[%s2 + $0x1a8] sm:$0xff]
  %v89 = vld [vmem:[%s2 + $0x1b0] sm:$0xff]
  %v90 = vld [vmem:[%s2 + $0x1b8] sm:$0xff]
  %v91 = vld [vmem:[%s2 + $0x1c0] sm:$0xff]
  %v92 = vld [vmem:[%s2 + $0x1c8] sm:$0xff]
  %v93 = vld [vmem:[%s2 + $0x1d0] sm:$0xff]
  %v94 = vld [vmem:[%s2 + $0x1d8] sm:$0xff]
  %v95 = vld [vmem:[%s2 + $0x1e0] sm:$0xff]
  %v96 = vld [vmem:[%s2 + $0x1e8] sm:$0xff]
  %v97 = vld [vmem:[%s2 + $0x1f0] sm:$0xff]
  %v98 = vld [vmem:[%s2 + $0x1f8] sm:$0xff]
  %v99 = vld [vmem:[%s3] sm:$0xff]
  %v100 = vld [vmem:[%s3 + $0x8] sm:$0xff]
  %v101 = vld [vmem:[%s3 + $0x10] sm:$0xff]
  %v102 = vld [vmem:[%s3 + $0x18] sm:$0xff]
  %v103 = vld [vmem:[%s3 + $0x20] sm:$0xff]
  %v104 = vld [vmem:[%s3 + $0x28] sm:$0xff]
  %v105 = vld [vmem:[%s3 + $0x30] sm:$0xff]
  %v106 = vld [vmem:[%s3 + $0x38] sm:$0xff]
  %v107 = vld [vmem:[%s3 + $0x40] sm:$0xff]
  %v108 = vld [vmem:[%s3 + $0x48] sm:$0xff]
  %v109 = vld [vmem:[%s3 + $0x50] sm:$0xff]
  %v110 = vld [vmem:[%s3 + $0x58] sm:$0xff]
  %v111 = vld [vmem:[%s3 + $0x60] sm:$0xff]
  %v112 = vld [vmem:[%s3 + $0x68] sm:$0xff]
  %v113 = vld [vmem:[%s3 + $0x70] sm:$0xff]
  %v114 = vld [vmem:[%s3 + $0x78] sm:$0xff]
  %vm115 = vcmask 523264
  %v117 = vsel %vm115, %v34, 0
  %119 = vmatprep.subr.mxu0 0.0
  %120 = vmatpush1.msra.mxu0 0.0
  %121 = vmatprep.subr.mxu0 0.0
  %122 = vmatpush1.msra.mxu0 0.0
  %123 = vmatprep.subr.mxu0 0.0
  %124 = vmatpush1.msra.mxu0 0.0
  %125 = vmatprep.subr.mxu0 0.0
  %126 = vmatpush1.msra.mxu0 0.0
  %127 = vmatprep.subr.mxu0 0.0
  %128 = vmatpush1.msra.mxu0 0.0
  %129 = vmatprep.subr.mxu0 0.0
  %130 = vmatpush1.msra.mxu0 0.0
  %131 = vmatprep.subr.mxu0 0.0
  %132 = vmatpush1.msra.mxu0 0.0
  %133 = vmatprep.subr.mxu0 0.0
  %134 = vmatpush1.msra.mxu0 0.0
  %135 = vmatprep.subr.mxu0 %v114
  %136 = vmatpush1.msra.mxu0 %v113
  %137 = vmatprep.subr.mxu0 %v112
  %138 = vmatpush1.msra.mxu0 %v111
  %139 = vmatprep.subr.mxu0 %v110
  %140 = vmatpush1.msra.mxu0 %v109
  %141 = vmatprep.subr.mxu0 %v108
  %142 = vmatpush1.msra.mxu0 %v107
  %143 = vmatprep.subr.mxu0 %v106
  %144 = vmatpush1.msra.mxu0 %v105
  %145 = vmatprep.subr.mxu0 %v104
  %146 = vmatpush1.msra.mxu0 %v103
  %147 = vmatprep.subr.mxu0 %v102
  %148 = vmatpush1.msra.mxu0 %v101
  %149 = vmatprep.subr.mxu0 %v100
  %150 = vmatpush1.msra.mxu0 %v99
  %151 = vmatprep.subr.mxu0 0.0
  %152 = vmatpush2.msra.mxu0 0.0
  %153 = vmatprep.subr.mxu0 0.0
  %154 = vmatpush2.msra.mxu0 0.0
  %155 = vmatprep.subr.mxu0 0.0
  %156 = vmatpush2.msra.mxu0 0.0
  %157 = vmatprep.subr.mxu0 0.0
  %158 = vmatpush2.msra.mxu0 0.0
  %159 = vmatprep.subr.mxu0 0.0
  %160 = vmatpush2.msra.mxu0 0.0
  %161 = vmatprep.subr.mxu0 0.0
  %162 = vmatpush2.msra.mxu0 0.0
  %163 = vmatprep.subr.mxu0 0.0
  %164 = vmatpush2.msra.mxu0 0.0
  %165 = vmatprep.subr.mxu0 0.0
  %166 = vmatpush2.msra.mxu0 0.0
  %167 = vmatprep.subr.mxu0 0.0
  %168 = vmatpush2.msra.mxu0 0.0
  %169 = vmatprep.subr.mxu0 0.0
  %170 = vmatpush2.msra.mxu0 0.0
  %171 = vmatprep.subr.mxu0 0.0
  %172 = vmatpush2.msra.mxu0 0.0
  %173 = vmatprep.subr.mxu0 0.0
  %174 = vmatpush2.msra.mxu0 0.0
  %175 = vmatprep.subr.mxu0 0.0
  %176 = vmatpush2.msra.mxu0 0.0
  %177 = vmatprep.subr.mxu0 0.0
  %178 = vmatpush2.msra.mxu0 0.0
  %179 = vmatprep.subr.mxu0 0.0
  %180 = vmatpush2.msra.mxu0 0.0
  %181 = vmatprep.subr.mxu0 0.0
  %182 = vmatpush2.msra.mxu0 0.0
  %183 = vmatprep.mubr.f32.mxu0 0.0
  %184 = vmatmul.mubr.f32.gmra.mxu0 %v117
  %v185 = vpop.f32.mrf.mxu0
  %v186 = vadd.f32 0.0, %v185
  %v187 = vpop.f32.mrf.mxu0
  %v188 = vadd.f32 0.0, %v187
  %189 = vdwg.mxu0
  %190 = vmatprep.subr.mxu0 %v66
  %191 = vmatpush1.msra.mxu0 %v65
  %192 = vmatprep.subr.mxu0 %v64
  %193 = vmatpush1.msra.mxu0 %v63
  %194 = vmatprep.subr.mxu0 %v62
  %195 = vmatpush1.msra.mxu0 %v61
  %196 = vmatprep.subr.mxu0 %v60
  %197 = vmatpush1.msra.mxu0 %v59
  %198 = vmatprep.subr.mxu0 %v58
  %199 = vmatpush1.msra.mxu0 %v57
  %200 = vmatprep.subr.mxu0 %v56
  %201 = vmatpush1.msra.mxu0 %v55
  %202 = vmatprep.subr.mxu0 %v54
  %203 = vmatpush1.msra.mxu0 %v53
  %204 = vmatprep.subr.mxu0 %v52
  %205 = vmatpush1.msra.mxu0 %v51
  %206 = vmatprep.subr.mxu0 %v50
  %207 = vmatpush1.msra.mxu0 %v49
  %208 = vmatprep.subr.mxu0 %v48
  %209 = vmatpush1.msra.mxu0 %v47
  %210 = vmatprep.subr.mxu0 %v46
  %211 = vmatpush1.msra.mxu0 %v45
  %212 = vmatprep.subr.mxu0 %v44
  %213 = vmatpush1.msra.mxu0 %v43
  %214 = vmatprep.subr.mxu0 %v42
  %215 = vmatpush1.msra.mxu0 %v41
  %216 = vmatprep.subr.mxu0 %v40
  %217 = vmatpush1.msra.mxu0 %v39
  %218 = vmatprep.subr.mxu0 %v38
  %219 = vmatpush1.msra.mxu0 %v37
  %220 = vmatprep.subr.mxu0 %v36
  %221 = vmatpush1.msra.mxu0 %v35
  %222 = vmatprep.subr.mxu0 %v98
  %223 = vmatpush2.msra.mxu0 %v97
  %224 = vmatprep.subr.mxu0 %v96
  %225 = vmatpush2.msra.mxu0 %v95
  %226 = vmatprep.subr.mxu0 %v94
  %227 = vmatpush2.msra.mxu0 %v93
  %228 = vmatprep.subr.mxu0 %v92
  %229 = vmatpush2.msra.mxu0 %v91
  %230 = vmatprep.subr.mxu0 %v90
  %231 = vmatpush2.msra.mxu0 %v89
  %232 = vmatprep.subr.mxu0 %v88
  %233 = vmatpush2.msra.mxu0 %v87
  %234 = vmatprep.subr.mxu0 %v86
  %235 = vmatpush2.msra.mxu0 %v85
  %236 = vmatprep.subr.mxu0 %v84
  %237 = vmatpush2.msra.mxu0 %v83
  %238 = vmatprep.subr.mxu0 %v82
  %239 = vmatpush2.msra.mxu0 %v81
  %240 = vmatprep.subr.mxu0 %v80
  %241 = vmatpush2.msra.mxu0 %v79
  %242 = vmatprep.subr.mxu0 %v78
  %243 = vmatpush2.msra.mxu0 %v77
  %244 = vmatprep.subr.mxu0 %v76
  %245 = vmatpush2.msra.mxu0 %v75
  %246 = vmatprep.subr.mxu0 %v74
  %247 = vmatpush2.msra.mxu0 %v73
  %248 = vmatprep.subr.mxu0 %v72
  %249 = vmatpush2.msra.mxu0 %v71
  %250 = vmatprep.subr.mxu0 %v70
  %251 = vmatpush2.msra.mxu0 %v69
  %252 = vmatprep.subr.mxu0 %v68
  %253 = vmatpush2.msra.mxu0 %v67
  %254 = vmatprep.mubr.f32.mxu0 %v33
  %255 = vmatmul.mubr.f32.gmra.mxu0 %v32
  %v256 = vpop.f32.mrf.mxu0
  %v257 = vadd.f32 %v186, %v256
  %v258 = vpop.f32.mrf.mxu0
  %v259 = vadd.f32 %v188, %v258
  %260 = vdwg.mxu0
  %v261 = vld [vmem:[%s4] sm:$0x3]
  %v263 = vlaneseq
  %v264 = vshrl.u32 %v263, 7
  %v265 = vsub.s32 0, %v264
  %v266 = vrot.slane %v261, %v265
  %v267 = vlaneseq
  %v268 = vshrl.u32 %v267, 7
  %v269 = vsub.s32 1, %v268
  %v270 = vrot.slane %v261, %v269
  %v273 = vadd.f32 %v257, %v266
  %v274 = vadd.f32 %v259, %v270
  %v275 = vmax.f32 %v273, 0.0
  %v276 = vmax.f32 %v274, 0.0
  %v277 = vld [vmem:[%s5] sm:$0xff]
  %v278 = vld [vmem:[%s5 + $0x8] sm:$0xff]
  %v279 = vld [vmem:[%s5 + $0x10] sm:$0xff]
  %v280 = vld [vmem:[%s5 + $0x18] sm:$0xff]
  %v281 = vld [vmem:[%s5 + $0x20] sm:$0xff]
  %v282 = vld [vmem:[%s5 + $0x28] sm:$0xff]
  %v283 = vld [vmem:[%s5 + $0x30] sm:$0xff]
  %v284 = vld [vmem:[%s5 + $0x38] sm:$0xff]
  %v285 = vld [vmem:[%s5 + $0x40] sm:$0xff]
  %v286 = vld [vmem:[%s5 + $0x48] sm:$0xff]
  %v287 = vld [vmem:[%s5 + $0x50] sm:$0xff]
  %v288 = vld [vmem:[%s5 + $0x58] sm:$0xff]
  %v289 = vld [vmem:[%s5 + $0x60] sm:$0xff]
  %v290 = vld [vmem:[%s5 + $0x68] sm:$0xff]
  %v291 = vld [vmem:[%s5 + $0x70] sm:$0xff]
  %v292 = vld [vmem:[%s5 + $0x78] sm:$0xff]
  %v293 = vld [vmem:[%s5 + $0x80] sm:$0xff]
  %v294 = vld [vmem:[%s5 + $0x88] sm:$0xff]
  %v295 = vld [vmem:[%s5 + $0x90] sm:$0xff]
  %v296 = vld [vmem:[%s5 + $0x98] sm:$0xff]
  %v297 = vld [vmem:[%s5 + $0xa0] sm:$0xff]
  %v298 = vld [vmem:[%s5 + $0xa8] sm:$0xff]
  %v299 = vld [vmem:[%s5 + $0xb0] sm:$0xff]
  %v300 = vld [vmem:[%s5 + $0xb8] sm:$0xff]
  %v301 = vld [vmem:[%s5 + $0xc0] sm:$0xff]
  %v302 = vld [vmem:[%s5 + $0xc8] sm:$0xff]
  %v303 = vld [vmem:[%s5 + $0xd0] sm:$0xff]
  %v304 = vld [vmem:[%s5 + $0xd8] sm:$0xff]
  %v305 = vld [vmem:[%s5 + $0xe0] sm:$0xff]
  %v306 = vld [vmem:[%s5 + $0xe8] sm:$0xff]
  %v307 = vld [vmem:[%s5 + $0xf0] sm:$0xff]
  %v308 = vld [vmem:[%s5 + $0xf8] sm:$0xff]
  %v309 = vld [vmem:[%s5 + $0x100] sm:$0xff]
  %v310 = vld [vmem:[%s5 + $0x108] sm:$0xff]
  %v311 = vld [vmem:[%s5 + $0x110] sm:$0xff]
  %v312 = vld [vmem:[%s5 + $0x118] sm:$0xff]
  %v313 = vld [vmem:[%s5 + $0x120] sm:$0xff]
  %v314 = vld [vmem:[%s5 + $0x128] sm:$0xff]
  %v315 = vld [vmem:[%s5 + $0x130] sm:$0xff]
  %v316 = vld [vmem:[%s5 + $0x138] sm:$0xff]
  %v317 = vld [vmem:[%s5 + $0x140] sm:$0xff]
  %v318 = vld [vmem:[%s5 + $0x148] sm:$0xff]
  %v319 = vld [vmem:[%s5 + $0x150] sm:$0xff]
  %v320 = vld [vmem:[%s5 + $0x158] sm:$0xff]
  %v321 = vld [vmem:[%s5 + $0x160] sm:$0xff]
  %v322 = vld [vmem:[%s5 + $0x168] sm:$0xff]
  %v323 = vld [vmem:[%s5 + $0x170] sm:$0xff]
  %v324 = vld [vmem:[%s5 + $0x178] sm:$0xff]
  %v325 = vld [vmem:[%s5 + $0x180] sm:$0xff]
  %v326 = vld [vmem:[%s5 + $0x188] sm:$0xff]
  %v327 = vld [vmem:[%s5 + $0x190] sm:$0xff]
  %v328 = vld [vmem:[%s5 + $0x198] sm:$0xff]
  %v329 = vld [vmem:[%s5 + $0x1a0] sm:$0xff]
  %v330 = vld [vmem:[%s5 + $0x1a8] sm:$0xff]
  %v331 = vld [vmem:[%s5 + $0x1b0] sm:$0xff]
  %v332 = vld [vmem:[%s5 + $0x1b8] sm:$0xff]
  %v333 = vld [vmem:[%s5 + $0x1c0] sm:$0xff]
  %v334 = vld [vmem:[%s5 + $0x1c8] sm:$0xff]
  %v335 = vld [vmem:[%s5 + $0x1d0] sm:$0xff]
  %v336 = vld [vmem:[%s5 + $0x1d8] sm:$0xff]
  %v337 = vld [vmem:[%s5 + $0x1e0] sm:$0xff]
  %v338 = vld [vmem:[%s5 + $0x1e8] sm:$0xff]
  %v339 = vld [vmem:[%s5 + $0x1f0] sm:$0xff]
  %v340 = vld [vmem:[%s5 + $0x1f8] sm:$0xff]
  %v341 = vld [vmem:[%s6] sm:$0x3]
  %v343 = vlaneseq
  %v344 = vshrl.u32 %v343, 7
  %v345 = vsub.s32 0, %v344
  %v346 = vrot.slane %v341, %v345
  %v347 = vlaneseq
  %v348 = vshrl.u32 %v347, 7
  %v349 = vsub.s32 1, %v348
  %v350 = vrot.slane %v341, %v349
  %353 = vmatprep.subr.mxu0 %v308
  %354 = vmatpush1.msra.mxu0 %v307
  %355 = vmatprep.subr.mxu0 %v306
  %356 = vmatpush1.msra.mxu0 %v305
  %357 = vmatprep.subr.mxu0 %v304
  %358 = vmatpush1.msra.mxu0 %v303
  %359 = vmatprep.subr.mxu0 %v302
  %360 = vmatpush1.msra.mxu0 %v301
  %361 = vmatprep.subr.mxu0 %v300
  %362 = vmatpush1.msra.mxu0 %v299
  %363 = vmatprep.subr.mxu0 %v298
  %364 = vmatpush1.msra.mxu0 %v297
  %365 = vmatprep.subr.mxu0 %v296
  %366 = vmatpush1.msra.mxu0 %v295
  %367 = vmatprep.subr.mxu0 %v294
  %368 = vmatpush1.msra.mxu0 %v293
  %369 = vmatprep.subr.mxu0 %v292
  %370 = vmatpush1.msra.mxu0 %v291
  %371 = vmatprep.subr.mxu0 %v290
  %372 = vmatpush1.msra.mxu0 %v289
  %373 = vmatprep.subr.mxu0 %v288
  %374 = vmatpush1.msra.mxu0 %v287
  %375 = vmatprep.subr.mxu0 %v286
  %376 = vmatpush1.msra.mxu0 %v285
  %377 = vmatprep.subr.mxu0 %v284
  %378 = vmatpush1.msra.mxu0 %v283
  %379 = vmatprep.subr.mxu0 %v282
  %380 = vmatpush1.msra.mxu0 %v281
  %381 = vmatprep.subr.mxu0 %v280
  %382 = vmatpush1.msra.mxu0 %v279
  %383 = vmatprep.subr.mxu0 %v278
  %384 = vmatpush1.msra.mxu0 %v277
  %385 = vmatprep.subr.mxu0 %v340
  %386 = vmatpush2.msra.mxu0 %v339
  %387 = vmatprep.subr.mxu0 %v338
  %388 = vmatpush2.msra.mxu0 %v337
  %389 = vmatprep.subr.mxu0 %v336
  %390 = vmatpush2.msra.mxu0 %v335
  %391 = vmatprep.subr.mxu0 %v334
  %392 = vmatpush2.msra.mxu0 %v333
  %393 = vmatprep.subr.mxu0 %v332
  %394 = vmatpush2.msra.mxu0 %v331
  %395 = vmatprep.subr.mxu0 %v330
  %396 = vmatpush2.msra.mxu0 %v329
  %397 = vmatprep.subr.mxu0 %v328
  %398 = vmatpush2.msra.mxu0 %v327
  %399 = vmatprep.subr.mxu0 %v326
  %400 = vmatpush2.msra.mxu0 %v325
  %401 = vmatprep.subr.mxu0 %v324
  %402 = vmatpush2.msra.mxu0 %v323
  %403 = vmatprep.subr.mxu0 %v322
  %404 = vmatpush2.msra.mxu0 %v321
  %405 = vmatprep.subr.mxu0 %v320
  %406 = vmatpush2.msra.mxu0 %v319
  %407 = vmatprep.subr.mxu0 %v318
  %408 = vmatpush2.msra.mxu0 %v317
  %409 = vmatprep.subr.mxu0 %v316
  %410 = vmatpush2.msra.mxu0 %v315
  %411 = vmatprep.subr.mxu0 %v314
  %412 = vmatpush2.msra.mxu0 %v313
  %413 = vmatprep.subr.mxu0 %v312
  %414 = vmatpush2.msra.mxu0 %v311
  %415 = vmatprep.subr.mxu0 %v310
  %416 = vmatpush2.msra.mxu0 %v309
  %417 = vmatprep.mubr.f32.mxu0 %v276
  %418 = vmatmul.mubr.f32.gmra.mxu0 %v275
  %v419 = vpop.f32.mrf.mxu0
  %v420 = vadd.f32 %v346, %v419
  %v421 = vpop.f32.mrf.mxu0
  %v422 = vadd.f32 %v350, %v421
  %423 = vdwg.mxu0
  %v424 = vmax.f32 %v420, 0.0
  %v425 = vmax.f32 %v422, 0.0
  %v426 = vld [vmem:[%s7] sm:$0xff]
  %v427 = vld [vmem:[%s7 + $0x8] sm:$0xff]
  %v428 = vld [vmem:[%s7 + $0x10] sm:$0xff]
  %v429 = vld [vmem:[%s7 + $0x18] sm:$0xff]
  %v430 = vld [vmem:[%s7 + $0x20] sm:$0xff]
  %v431 = vld [vmem:[%s7 + $0x28] sm:$0xff]
  %v432 = vld [vmem:[%s7 + $0x30] sm:$0xff]
  %v433 = vld [vmem:[%s7 + $0x38] sm:$0xff]
  %v434 = vld [vmem:[%s7 + $0x40] sm:$0xff]
  %v435 = vld [vmem:[%s7 + $0x48] sm:$0xff]
  %v436 = vld [vmem:[%s7 + $0x50] sm:$0xff]
  %v437 = vld [vmem:[%s7 + $0x58] sm:$0xff]
  %v438 = vld [vmem:[%s7 + $0x60] sm:$0xff]
  %v439 = vld [vmem:[%s7 + $0x68] sm:$0xff]
  %v440 = vld [vmem:[%s7 + $0x70] sm:$0xff]
  %v441 = vld [vmem:[%s7 + $0x78] sm:$0xff]
  %v442 = vld [vmem:[%s7 + $0x80] sm:$0xff]
  %v443 = vld [vmem:[%s7 + $0x88] sm:$0xff]
  %v444 = vld [vmem:[%s7 + $0x90] sm:$0xff]
  %v445 = vld [vmem:[%s7 + $0x98] sm:$0xff]
  %v446 = vld [vmem:[%s7 + $0xa0] sm:$0xff]
  %v447 = vld [vmem:[%s7 + $0xa8] sm:$0xff]
  %v448 = vld [vmem:[%s7 + $0xb0] sm:$0xff]
  %v449 = vld [vmem:[%s7 + $0xb8] sm:$0xff]
  %v450 = vld [vmem:[%s7 + $0xc0] sm:$0xff]
  %v451 = vld [vmem:[%s7 + $0xc8] sm:$0xff]
  %v452 = vld [vmem:[%s7 + $0xd0] sm:$0xff]
  %v453 = vld [vmem:[%s7 + $0xd8] sm:$0xff]
  %v454 = vld [vmem:[%s7 + $0xe0] sm:$0xff]
  %v455 = vld [vmem:[%s7 + $0xe8] sm:$0xff]
  %v456 = vld [vmem:[%s7 + $0xf0] sm:$0xff]
  %v457 = vld [vmem:[%s7 + $0xf8] sm:$0xff]
  %v458 = vld [vmem:[%s8] sm:$0x1]
  %v460 = vlaneseq
  %v461 = vshrl.u32 %v460, 7
  %v462 = vsub.s32 0, %v461
  %v463 = vrot.slane %v458, %v462
  %465 = vmatprep.subr.mxu0 0.0
  %466 = vmatpush1.msra.mxu0 %v441
  %467 = vmatprep.subr.mxu0 0.0
  %468 = vmatpush1.msra.mxu0 %v440
  %469 = vmatprep.subr.mxu0 0.0
  %470 = vmatpush1.msra.mxu0 %v439
  %471 = vmatprep.subr.mxu0 0.0
  %472 = vmatpush1.msra.mxu0 %v438
  %473 = vmatprep.subr.mxu0 0.0
  %474 = vmatpush1.msra.mxu0 %v437
  %475 = vmatprep.subr.mxu0 0.0
  %476 = vmatpush1.msra.mxu0 %v436
  %477 = vmatprep.subr.mxu0 0.0
  %478 = vmatpush1.msra.mxu0 %v435
  %479 = vmatprep.subr.mxu0 0.0
  %480 = vmatpush1.msra.mxu0 %v434
  %481 = vmatprep.subr.mxu0 0.0
  %482 = vmatpush1.msra.mxu0 %v433
  %483 = vmatprep.subr.mxu0 0.0
  %484 = vmatpush1.msra.mxu0 %v432
  %485 = vmatprep.subr.mxu0 0.0
  %486 = vmatpush1.msra.mxu0 %v431
  %487 = vmatprep.subr.mxu0 0.0
  %488 = vmatpush1.msra.mxu0 %v430
  %489 = vmatprep.subr.mxu0 0.0
  %490 = vmatpush1.msra.mxu0 %v429
  %491 = vmatprep.subr.mxu0 0.0
  %492 = vmatpush1.msra.mxu0 %v428
  %493 = vmatprep.subr.mxu0 0.0
  %494 = vmatpush1.msra.mxu0 %v427
  %495 = vmatprep.subr.mxu0 0.0
  %496 = vmatpush1.msra.mxu0 %v426
  %497 = vmatprep.subr.mxu0 0.0
  %498 = vmatpush2.msra.mxu0 %v457
  %499 = vmatprep.subr.mxu0 0.0
  %500 = vmatpush2.msra.mxu0 %v456
  %501 = vmatprep.subr.mxu0 0.0
  %502 = vmatpush2.msra.mxu0 %v455
  %503 = vmatprep.subr.mxu0 0.0
  %504 = vmatpush2.msra.mxu0 %v454
  %505 = vmatprep.subr.mxu0 0.0
  %506 = vmatpush2.msra.mxu0 %v453
  %507 = vmatprep.subr.mxu0 0.0
  %508 = vmatpush2.msra.mxu0 %v452
  %509 = vmatprep.subr.mxu0 0.0
  %510 = vmatpush2.msra.mxu0 %v451
  %511 = vmatprep.subr.mxu0 0.0
  %512 = vmatpush2.msra.mxu0 %v450
  %513 = vmatprep.subr.mxu0 0.0
  %514 = vmatpush2.msra.mxu0 %v449
  %515 = vmatprep.subr.mxu0 0.0
  %516 = vmatpush2.msra.mxu0 %v448
  %517 = vmatprep.subr.mxu0 0.0
  %518 = vmatpush2.msra.mxu0 %v447
  %519 = vmatprep.subr.mxu0 0.0
  %520 = vmatpush2.msra.mxu0 %v446
  %521 = vmatprep.subr.mxu0 0.0
  %522 = vmatpush2.msra.mxu0 %v445
  %523 = vmatprep.subr.mxu0 0.0
  %524 = vmatpush2.msra.mxu0 %v444
  %525 = vmatprep.subr.mxu0 0.0
  %526 = vmatpush2.msra.mxu0 %v443
  %527 = vmatprep.subr.mxu0 0.0
  %528 = vmatpush2.msra.mxu0 %v442
  %529 = vmatprep.mubr.f32.mxu0 %v425
  %530 = vmatmul.mubr.f32.gmra.mxu0 %v424
  %v531 = vpop.f32.mrf.mxu0
  %v532 = vadd.f32 %v463, %v531
  %v533 = vpop.f32.mrf.mxu0
  %534 = vdwg.mxu0
  %535 = vst [vmem:[%s9] sm:$0xff] %v532
  // Predicated region
  $region38: #{mlp_forward.1} parent=0 // pred_check
    _
  $region39: #{mlp_forward.1} parent=0 // pred_check_branch
    %537 = sbr.rel (0) target = $region41
  $region40: #{mlp_forward.1} parent=0 // pred_region
    _
  $region41: #{mlp_forward.1} parent=0 // pred_fallthru
    _
  // Predicated region
  $region42: #{mlp_forward.1} parent=0 // pred_check
    _
  $region43: #{mlp_forward.1} parent=0 // pred_check_branch
    %539 = sbr.rel (0) target = $region45
  $region44: #{mlp_forward.1} parent=0 // pred_region
    _
  $region45: #{mlp_forward.1} parent=0 // pred_fallthru
    _

</llo_original>
